<compile_context>
chip_gen: v7x
topology: tpu7x:2x2x1
jax: 0.10.0
libtpu: 0.0.40
codegen_flags: <defaults>
</compile_context>

<pallas_src>
import math

import jax
import jax.numpy as jnp
from jax.experimental import pallas as pl
from jax.experimental.pallas import tpu as pltpu

# ----------------------- model config (consistent with DeepSeekMoE args) ------------------------
DIM = 256                                   # args.dim
FFN_INTER_DIM = 2                           # args.ffn_inter_dim
EXPERT_SCALE = 0.25                         # args.expert_scale
INTER_DIM = int(DIM * FFN_INTER_DIM * EXPERT_SCALE)   # 128: expert FFN hidden dim
DROP_RATE = 0.1                             # dropout is identity in eval/inference

_INV_SQRT2 = 1.0 / math.sqrt(2.0)


# ----------------------------------------- kernel -----------------------------------------------
def expert_ffn_kernel(x_ref, w1_ref, b1_ref, w2_ref, b2_ref, o_ref):
    """Fused ExpertFFN for one tile of tokens: x @ W1 + b1 -> GELU -> @ W2 + b2."""
    x = x_ref[...].astype(jnp.float32)                                        # (tile_T, D)
    h = jnp.dot(x, w1_ref[...], preferred_element_type=jnp.float32) + b1_ref[...]
    # exact (erf) GELU, matching nn.GELU() defaults; dropout = identity at inference
    h = 0.5 * h * (1.0 + jax.lax.erf(h * _INV_SQRT2))
    y = jnp.dot(h, w2_ref[...], preferred_element_type=jnp.float32) + b2_ref[...]
    o_ref[...] = y.astype(o_ref.dtype)


# ---------------------------------------- wrapper -----------------------------------------------
def expert_ffn(x, w1, b1, w2, b2, *, tile_t=256):
    """x: (B, S, D); w1: (D, I); b1: (I,); w2: (I, D); b2: (D,) -> (B, S, D)."""
    B, S, D = x.shape
    I = w1.shape[1]
    T = B * S
    x2d = x.reshape(T, D)

    # Pick a token tile: multiple of 8 (sublane), try to give the grid >= 2 parallel steps
    # so both TensorCores on v7x get work; keep it well within VMEM on all generations.
    tile = min(tile_t, max(8, T // 2))
    tile = max(8, (tile // 8) * 8)
    T_pad = pl.cdiv(T, tile) * tile
    if T_pad != T:
        x2d = jnp.pad(x2d, ((0, T_pad - T), (0, 0)))
    grid = (T_pad // tile,)

    out = pl.pallas_call(
        expert_ffn_kernel,
        out_shape=jax.ShapeDtypeStruct((T_pad, D), x.dtype),
        grid=grid,
        in_specs=[
            pl.BlockSpec((tile, D), lambda i: (i, 0)),     # activation tile (streamed)
            pl.BlockSpec((D, I), lambda i: (0, 0)),        # W1 (resident)
            pl.BlockSpec((1, I), lambda i: (0, 0)),        # b1
            pl.BlockSpec((I, D), lambda i: (0, 0)),        # W2 (resident)
            pl.BlockSpec((1, D), lambda i: (0, 0)),        # b2
        ],
        out_specs=pl.BlockSpec((tile, D), lambda i: (i, 0)),
        compiler_params=pltpu.CompilerParams(
            dimension_semantics=("parallel",),
            vmem_limit_bytes=64 << 20,
        ),
    )(x2d, w1, b1.reshape(1, I), w2, b2.reshape(1, D))

    return out[:T].reshape(B, S, D)


# ------------------------------------ pure-JAX reference ----------------------------------------
def expert_ffn_ref(x, w1, b1, w2, b2):
    h = jnp.einsum("bsd,di->bsi", x, w1) + b1
    h = 0.5 * h * (1.0 + jax.lax.erf(h * _INV_SQRT2))
    return jnp.einsum("bsi,id->bsd", h, w2) + b2


# -------------------------------------------- main ----------------------------------------------
def init_params(key):
    ks = jax.random.split(key, 4)
    scale = 0.02
    # NOTE: weights stored already transposed to (in, out) layout (PyTorch nn.Linear stores
    # (out, in) and computes x @ W.T); semantics are identical since we initialize here.
    return {
        "w1": scale * jax.random.normal(ks[0], (DIM, INTER_DIM), jnp.float32),
        "b1": scale * jax.random.normal(ks[1], (INTER_DIM,), jnp.float32),
        "w2": scale * jax.random.normal(ks[2], (INTER_DIM, DIM), jnp.float32),
        "b2": scale * jax.random.normal(ks[3], (DIM,), jnp.float32),
    }


if __name__ == "__main__":
    key = jax.random.PRNGKey(0)
    kp, kx = jax.random.split(key)
    params = init_params(kp)

    B, S = 2, 8
    x = jax.random.normal(kx, (B, S, DIM), jnp.float32)

    fn = jax.jit(lambda x, p: expert_ffn(x, p["w1"], p["b1"], p["w2"], p["b2"]))
    out = jax.block_until_ready(fn(x, params))

    ref = expert_ffn_ref(x, params["w1"], params["b1"], params["w2"], params["b2"])

    assert out.shape == (B, S, DIM), out.shape
    assert bool(jnp.all(jnp.isfinite(out)))
    assert bool(jnp.allclose(out, ref, atol=1e-4, rtol=1e-4)), float(jnp.max(jnp.abs(out - ref)))
    # TODO(synk): dropout is implemented as identity (inference mode); no stochastic path.
    print("KERNEL_OK")
</pallas_src>

<mosaic_0001>
module attributes {stable_mosaic.version = 11 : i64} {
  func.func @expert_ffn_kernel(%arg0: i32, %arg1: memref<8x256xf32, #tpu.memory_space<vmem>>, %arg2: memref<256x128xf32, #tpu.memory_space<vmem>>, %arg3: memref<1x128xf32, #tpu.memory_space<vmem>>, %arg4: memref<128x256xf32, #tpu.memory_space<vmem>>, %arg5: memref<1x256xf32, #tpu.memory_space<vmem>>, %arg6: memref<8x256xf32, #tpu.memory_space<vmem>>) attributes {dimension_semantics = [#tpu.dimension_semantics<parallel>], iteration_bounds = array<i64: 2>, scalar_prefetch = 0 : i64, scratch_operands = 0 : i64, tpu.core_type = #tpu.core_type<tc>, window_params = [{transform_indices = @transform_0, window_bounds = array<i64: 8, 256>}, {pipeline_mode = #tpu.pipeline_mode<synchronous>, transform_indices = @transform_1, window_bounds = array<i64: 256, 128>}, {pipeline_mode = #tpu.pipeline_mode<synchronous>, transform_indices = @transform_2, window_bounds = array<i64: 1, 128>}, {pipeline_mode = #tpu.pipeline_mode<synchronous>, transform_indices = @transform_3, window_bounds = array<i64: 128, 256>}, {pipeline_mode = #tpu.pipeline_mode<synchronous>, transform_indices = @transform_4, window_bounds = array<i64: 1, 256>}, {transform_indices = @transform_5, window_bounds = array<i64: 8, 256>}]} {
    %c0 = arith.constant 0 : index
    %c0_0 = arith.constant 0 : index
    %0 = vector.load %arg1[%c0, %c0_0] : memref<8x256xf32, #tpu.memory_space<vmem>>, vector<8x256xf32>
    %c0_1 = arith.constant 0 : index
    %c0_2 = arith.constant 0 : index
    %1 = vector.load %arg2[%c0_1, %c0_2] : memref<256x128xf32, #tpu.memory_space<vmem>>, vector<256x128xf32>
    %cst = arith.constant dense<0.000000e+00> : vector<8x128xf32>
    %2 = tpu.matmul %0, %1, %cst {dimension_numbers = #tpu.dot_dimension_numbers<[1], [0], [0], [1], [0, 0, 1, 1], [], []>} : vector<8x256xf32>, vector<256x128xf32>, vector<8x128xf32> -> vector<8x128xf32>
    %c0_3 = arith.constant 0 : index
    %c0_4 = arith.constant 0 : index
    %3 = vector.load %arg3[%c0_3, %c0_4] : memref<1x128xf32, #tpu.memory_space<vmem>>, vector<1x128xf32>
    %4 = vector.broadcast %3 : vector<1x128xf32> to vector<8x128xf32>
    %5 = arith.addf %2, %4 : vector<8x128xf32>
    %cst_5 = arith.constant 5.000000e-01 : f32
    %6 = vector.broadcast %cst_5 : f32 to vector<8x128xf32>
    %7 = arith.mulf %6, %5 : vector<8x128xf32>
    %cst_6 = arith.constant 0.707106769 : f32
    %8 = vector.broadcast %cst_6 : f32 to vector<8x128xf32>
    %9 = arith.mulf %5, %8 : vector<8x128xf32>
    %10 = math.erf %9 : vector<8x128xf32>
    %cst_7 = arith.constant 1.000000e+00 : f32
    %11 = vector.broadcast %cst_7 : f32 to vector<8x128xf32>
    %12 = arith.addf %11, %10 : vector<8x128xf32>
    %13 = arith.mulf %7, %12 : vector<8x128xf32>
    %c0_8 = arith.constant 0 : index
    %c0_9 = arith.constant 0 : index
    %14 = vector.load %arg4[%c0_8, %c0_9] : memref<128x256xf32, #tpu.memory_space<vmem>>, vector<128x256xf32>
    %cst_10 = arith.constant dense<0.000000e+00> : vector<8x256xf32>
    %15 = tpu.matmul %13, %14, %cst_10 {dimension_numbers = #tpu.dot_dimension_numbers<[1], [0], [0], [1], [0, 0, 1, 1], [], []>} : vector<8x128xf32>, vector<128x256xf32>, vector<8x256xf32> -> vector<8x256xf32>
    %c0_11 = arith.constant 0 : index
    %c0_12 = arith.constant 0 : index
    %16 = vector.load %arg5[%c0_11, %c0_12] : memref<1x256xf32, #tpu.memory_space<vmem>>, vector<1x256xf32>
    %17 = vector.broadcast %16 : vector<1x256xf32> to vector<8x256xf32>
    %18 = arith.addf %15, %17 : vector<8x256xf32>
    %c0_13 = arith.constant 0 : index
    %c0_14 = arith.constant 0 : index
    %19 = vector.load %arg6[%c0_13, %c0_14] : memref<8x256xf32, #tpu.memory_space<vmem>>, vector<8x256xf32>
    tpu.vector_store %arg6[%c0_13, %c0_14], %18 {strides = array<i32>} : memref<8x256xf32, #tpu.memory_space<vmem>>, vector<8x256xf32>,
    return
  }
  func.func @transform_0(%arg0: i32) -> (i32, i32) {
    %c0_i32 = arith.constant 0 : i32
    %c0_i32_0 = arith.constant 0 : i32
    return %arg0, %c0_i32 : i32, i32
  }
  func.func @transform_1(%arg0: i32) -> (i32, i32) {
    %c0_i32 = arith.constant 0 : i32
    %c0_i32_0 = arith.constant 0 : i32
    %c0_i32_1 = arith.constant 0 : i32
    return %c0_i32, %c0_i32_0 : i32, i32
  }
  func.func @transform_2(%arg0: i32) -> (i32, i32) {
    %c0_i32 = arith.constant 0 : i32
    %c0_i32_0 = arith.constant 0 : i32
    %c0_i32_1 = arith.constant 0 : i32
    return %c0_i32, %c0_i32_0 : i32, i32
  }
  func.func @transform_3(%arg0: i32) -> (i32, i32) {
    %c0_i32 = arith.constant 0 : i32
    %c0_i32_0 = arith.constant 0 : i32
    %c0_i32_1 = arith.constant 0 : i32
    return %c0_i32, %c0_i32_0 : i32, i32
  }
  func.func @transform_4(%arg0: i32) -> (i32, i32) {
    %c0_i32 = arith.constant 0 : i32
    %c0_i32_0 = arith.constant 0 : i32
    %c0_i32_1 = arith.constant 0 : i32
    return %c0_i32, %c0_i32_0 : i32, i32
  }
  func.func @transform_5(%arg0: i32) -> (i32, i32) {
    %c0_i32 = arith.constant 0 : i32
    %c0_i32_0 = arith.constant 0 : i32
    return %arg0, %c0_i32 : i32, i32
  }
}

</mosaic_0001>

<llo_original>
// kernel: _lambda_.1
$region0: #{_lambda_.1}
  #allocation0 [shape = 'u32[]', space=smem, size = 0x4, offset = 0x4, fixed_abs, tag = 'smem constant byte address 0x4 - core index']
  #allocation1 [shape = 'u32[144,128]{1,0:T(1,128)}', space=vmem, size = 0x12000, scoped, tag = 'internal scratch']
  %s0 = inlined_call_operand.hbm [shape: f32[16,256], index: 0, kind: input, shape index: {}]
  %s1 = inlined_call_operand.hbm [shape: f32[256,128], index: 1, kind: input, shape index: {}]
  %s2 = inlined_call_operand.hbm [shape: f32[1,128], index: 2, kind: input, shape index: {}]
  %s3 = inlined_call_operand.hbm [shape: f32[128,256], index: 3, kind: input, shape index: {}]
  %s4 = inlined_call_operand.hbm [shape: f32[1,256], index: 4, kind: input, shape index: {}]
  %s5 = inlined_call_operand.hbm [shape: f32[16,256], index: 5, kind: output, shape index: {}]
  %s6 = sld [smem:[#allocation0]]
  $region73: #{_lambda_.1} parent=0
    _
  %s8 = ssub.s32 1, %s6
  %s9 = scalar_select 0, %s8, %s6
  $region1: #{_lambda_.1} parent=0
    #allocation2 [shape = 'u8[16384]{0}', space=vmem, size = 0x4000, scoped, tag = 'input window, operand 0']
    #allocation3 [shape = 's32[2]{0}', space=sflag, size = 0x8, scoped, tag = 'scoped memory for _lambda_.1']
    #allocation4 [shape = 's32[2]{0}', space=sflag, size = 0x8, scoped, tag = 'scoped memory for _lambda_.1']
    #allocation5 [shape = 'u8[131072]{0}', space=vmem, size = 0x20000, scoped, tag = 'input window, operand 1, single buffered']
    #allocation6 [shape = 's32[1]{0}', space=sflag, size = 0x4, scoped, tag = 'scoped memory for _lambda_.1']
    #allocation7 [shape = 'u8[512]{0}', space=vmem, size = 0x400, scoped, tag = 'input window, operand 2, single buffered']
    #allocation8 [shape = 'u8[131072]{0}', space=vmem, size = 0x20000, scoped, tag = 'input window, operand 3, single buffered']
    #allocation9 [shape = 's32[1]{0}', space=sflag, size = 0x4, scoped, tag = 'scoped memory for _lambda_.1']
    #allocation10 [shape = 'u8[1024]{0}', space=vmem, size = 0x400, scoped, tag = 'input window, operand 4, single buffered']
    #allocation11 [shape = 'u8[16384]{0}', space=vmem, size = 0x4000, scoped, tag = 'output window, operand 0']
    %10 = vsyncpa [#allocation3], 0
    %s11 = scalar_lea.sflag [#allocation3], 1
    %12 = vsyncpa %s11, 0
    %13 = vsyncpa [#allocation6], 0
    %14 = vsyncpa [#allocation9], 0
    %15 = vsyncpa [#allocation4], 0
    %s16 = scalar_lea.sflag [#allocation4], 1
    %17 = vsyncpa %s16, 0
    loop: start=0, step=1, limit=4
    $region2: #{_lambda_.1} parent=1 // loop_pre_header
      _
    $region3: #{_lambda_.1} parent=1 // loop_header
      %s19 = sphi 0, %s23
      %p20 = scmp.ge.s32.totalorder %s19, 4
      %s29 = sphi 0, %s31
      %s32 = sphi 0, %s29
      %s33 = sphi 0, %s32
      %s49 = sphi 0, %s33
      %s53 = sphi 0, %s53
      %s55 = sphi 0, %s53
      %s56 = sphi 0, %s55
      %s70 = sphi 0, %s56
      %s74 = sphi 0, %s74
      %s76 = sphi 0, %s74
      %s77 = sphi 0, %s76
      %s91 = sphi 0, %s77
      %s95 = sphi 0, %s95
      %s97 = sphi 0, %s95
      %s98 = sphi 0, %s97
      %s112 = sphi 0, %s98
      %s116 = sphi 0, %s116
      %s118 = sphi 0, %s116
      %s119 = sphi 0, %s118
      %s133 = sphi 0, %s119
      %s139 = sphi 0, %s141
      %s142 = sphi 0, %s139
      %s143 = sphi 0, %s142
      %s159 = sphi 0, %s143
    $region4: #{_lambda_.1} parent=1 // loop_header_branch
      %22 = sbr.rel (%p20) target = $region8
    $region5: #{_lambda_.1} parent=1 // loop_body
      %s24 = ssub.s32 %s19, 1
      %s25 = ssub.s32 %s19, 2
      %s26 = sadd.s32 %s19, 1
      %s27 = ssub.s32 %s19, %s26
      %p28 = scmp.eq.s32.totalorder %s27, 0
      %s30 = sadd.s32 %s29, 1
      %s31 = scalar_select %p28, %s29, %s30
      %p34 = pneg %p28
      %p35 = scmp.eq.s32.totalorder %s19, 1
      %p36 = por %p34, %p35
      %p37 = scmp.ne.s32.totalorder %s29, %s32
      %p38 = scmp.eq.s32.totalorder %s19, 0
      %p39 = por %p37, %p38
      %p40 = scmp.ne.s32.totalorder %s29, %s32
      %p41 = scmp.eq.s32.totalorder %s24, 1
      %p42 = por %p40, %p41
      %p43 = scmp.ne.s32.totalorder %s32, %s33
      %p44 = scmp.eq.s32.totalorder %s24, 0
      %p45 = por %p43, %p44
      %p46 = scmp.ne.s32.totalorder %s32, %s33
      %p47 = scmp.eq.s32.totalorder %s25, 1
      %p48 = por %p46, %p47
      %p50 = scmp.ne.s32.totalorder %s33, %s49
      %p51 = scmp.eq.s32.totalorder %s25, 0
      %p52 = por %p50, %p51
      %s54 = sadd.s32 %s53, 1
      %p57 = scmp.eq.s32.totalorder %s19, 1
      %p58 = scmp.ne.s32.totalorder %s53, %s55
      %p59 = scmp.eq.s32.totalorder %s19, 0
      %p60 = por %p58, %p59
      %p61 = scmp.ne.s32.totalorder %s53, %s55
      %p62 = scmp.eq.s32.totalorder %s24, 1
      %p63 = por %p61, %p62
      %p64 = scmp.ne.s32.totalorder %s55, %s56
      %p65 = scmp.eq.s32.totalorder %s24, 0
      %p66 = por %p64, %p65
      %p67 = scmp.ne.s32.totalorder %s55, %s56
      %p68 = scmp.eq.s32.totalorder %s25, 1
      %p69 = por %p67, %p68
      %p71 = scmp.ne.s32.totalorder %s56, %s70
      %p72 = scmp.eq.s32.totalorder %s25, 0
      %p73 = por %p71, %p72
      %s75 = sadd.s32 %s74, 1
      %p78 = scmp.eq.s32.totalorder %s19, 1
      %p79 = scmp.ne.s32.totalorder %s74, %s76
      %p80 = scmp.eq.s32.totalorder %s19, 0
      %p81 = por %p79, %p80
      %p82 = scmp.ne.s32.totalorder %s74, %s76
      %p83 = scmp.eq.s32.totalorder %s24, 1
      %p84 = por %p82, %p83
      %p85 = scmp.ne.s32.totalorder %s76, %s77
      %p86 = scmp.eq.s32.totalorder %s24, 0
      %p87 = por %p85, %p86
      %p88 = scmp.ne.s32.totalorder %s76, %s77
      %p89 = scmp.eq.s32.totalorder %s25, 1
      %p90 = por %p88, %p89
      %p92 = scmp.ne.s32.totalorder %s77, %s91
      %p93 = scmp.eq.s32.totalorder %s25, 0
      %p94 = por %p92, %p93
      %s96 = sadd.s32 %s95, 1
      %p99 = scmp.eq.s32.totalorder %s19, 1
      %p100 = scmp.ne.s32.totalorder %s95, %s97
      %p101 = scmp.eq.s32.totalorder %s19, 0
      %p102 = por %p100, %p101
      %p103 = scmp.ne.s32.totalorder %s95, %s97
      %p104 = scmp.eq.s32.totalorder %s24, 1
      %p105 = por %p103, %p104
      %p106 = scmp.ne.s32.totalorder %s97, %s98
      %p107 = scmp.eq.s32.totalorder %s24, 0
      %p108 = por %p106, %p107
      %p109 = scmp.ne.s32.totalorder %s97, %s98
      %p110 = scmp.eq.s32.totalorder %s25, 1
      %p111 = por %p109, %p110
      %p113 = scmp.ne.s32.totalorder %s98, %s112
      %p114 = scmp.eq.s32.totalorder %s25, 0
      %p115 = por %p113, %p114
      %s117 = sadd.s32 %s116, 1
      %p120 = scmp.eq.s32.totalorder %s19, 1
      %p121 = scmp.ne.s32.totalorder %s116, %s118
      %p122 = scmp.eq.s32.totalorder %s19, 0
      %p123 = por %p121, %p122
      %p124 = scmp.ne.s32.totalorder %s116, %s118
      %p125 = scmp.eq.s32.totalorder %s24, 1
      %p126 = por %p124, %p125
      %p127 = scmp.ne.s32.totalorder %s118, %s119
      %p128 = scmp.eq.s32.totalorder %s24, 0
      %p129 = por %p127, %p128
      %p130 = scmp.ne.s32.totalorder %s118, %s119
      %p131 = scmp.eq.s32.totalorder %s25, 1
      %p132 = por %p130, %p131
      %p134 = scmp.ne.s32.totalorder %s119, %s133
      %p135 = scmp.eq.s32.totalorder %s25, 0
      %p136 = por %p134, %p135
      %s137 = ssub.s32 %s19, %s26
      %p138 = scmp.eq.s32.totalorder %s137, 0
      %s140 = sadd.s32 %s139, 1
      %s141 = scalar_select %p138, %s139, %s140
      %p144 = pneg %p138
      %p145 = scmp.eq.s32.totalorder %s19, 1
      %p146 = por %p144, %p145
      %p147 = scmp.ne.s32.totalorder %s139, %s142
      %p148 = scmp.eq.s32.totalorder %s19, 0
      %p149 = por %p147, %p148
      %p150 = scmp.ne.s32.totalorder %s139, %s142
      %p151 = scmp.eq.s32.totalorder %s24, 1
      %p152 = por %p150, %p151
      %p153 = scmp.ne.s32.totalorder %s142, %s143
      %p154 = scmp.eq.s32.totalorder %s24, 0
      %p155 = por %p153, %p154
      %p156 = scmp.ne.s32.totalorder %s142, %s143
      %p157 = scmp.eq.s32.totalorder %s25, 1
      %p158 = por %p156, %p157
      %p160 = scmp.ne.s32.totalorder %s143, %s159
      %p161 = scmp.eq.s32.totalorder %s25, 0
      %p162 = por %p160, %p161
      %p163 = scmp.le.s32.totalorder 1, %s19
      %p164 = scmp.lt.s32.totalorder %s19, 3
      %p165 = pnand %p163, %p164
      %p166 = pneg %p165
      // Predicated region
      $region9: #{_lambda_.1} parent=5 // pred_check
        _
      $region10: #{_lambda_.1} parent=5 // pred_check_branch
        %168 = sbr.rel (%p165) target = $region12
      $region11: #{_lambda_.1} parent=5 // pred_region
        %s169 = ssub.s32 %s19, 1
        // Predicated region
        $region13: #{_lambda_.1} parent=11 // pred_check
          %p170 = pneg %p66
        $region14: #{_lambda_.1} parent=11 // pred_check_branch
          %172 = sbr.rel (%p170) target = $region16
        $region15: #{_lambda_.1} parent=11 // pred_region
          %s174 = ssub.s32 4096, 4096
          %175 = vsyncadd [#allocation6], %s174
          %s176 = sshll.u32 [#allocation5], 4
          %s177 = int_to_ptr.vmem [resolvable:$true] %s176
          %182 = dma.hbm_to_vmem [thread:$0]  %s1, 4096, %s177, [#allocation6], 128, 128, 8
        $region16: #{_lambda_.1} parent=11 // pred_fallthru
          _
        // Predicated region
        $region17: #{_lambda_.1} parent=11 // pred_check
          %p183 = pneg %p87
        $region18: #{_lambda_.1} parent=11 // pred_check_branch
          %185 = sbr.rel (%p183) target = $region20
        $region19: #{_lambda_.1} parent=11 // pred_region
          %s187 = ssub.s32 16, 16
          %188 = vsyncadd [#allocation6], %s187
          %s190 = sshll.u32 [#allocation7], 4
          %s191 = int_to_ptr.vmem [resolvable:$true] %s190
          %193 = dma.hbm_to_vmem [thread:$0]  %s2, 16, %s191, [#allocation6]
        $region20: #{_lambda_.1} parent=11 // pred_fallthru
          _
        // Predicated region
        $region21: #{_lambda_.1} parent=11 // pred_check
          %p194 = pneg %p108
        $region22: #{_lambda_.1} parent=11 // pred_check_branch
          %196 = sbr.rel (%p194) target = $region24
        $region23: #{_lambda_.1} parent=11 // pred_region
          %s198 = ssub.s32 4096, 4096
          %199 = vsyncadd [#allocation9], %s198
          %s200 = sshll.u32 [#allocation8], 4
          %s201 = int_to_ptr.vmem [resolvable:$true] %s200
          %206 = dma.hbm_to_vmem [thread:$0]  %s3, 4096, %s201, [#allocation9], 256, 256, 16
        $region24: #{_lambda_.1} parent=11 // pred_fallthru
          _
        // Predicated region
        $region25: #{_lambda_.1} parent=11 // pred_check
          %p207 = pneg %p129
        $region26: #{_lambda_.1} parent=11 // pred_check_branch
          %209 = sbr.rel (%p207) target = $region28
        $region27: #{_lambda_.1} parent=11 // pred_region
          %s211 = ssub.s32 32, 32
          %212 = vsyncadd [#allocation9], %s211
          %s214 = sshll.u32 [#allocation10], 4
          %s215 = int_to_ptr.vmem [resolvable:$true] %s214
          %217 = dma.hbm_to_vmem [thread:$0]  %s4, 32, %s215, [#allocation9]
        $region28: #{_lambda_.1} parent=11 // pred_fallthru
          _
      $region12: #{_lambda_.1} parent=5 // pred_fallthru
        _
      %p218 = scmp.lt.s32.totalorder %s19, 2
      // Predicated region
      $region29: #{_lambda_.1} parent=5 // pred_check
        %p219 = pneg %p218
      $region30: #{_lambda_.1} parent=5 // pred_check_branch
        %221 = sbr.rel (%p219) target = $region32
      $region31: #{_lambda_.1} parent=5 // pred_region
        // Predicated region
        $region33: #{_lambda_.1} parent=31 // pred_check
          %p222 = pneg %p39
        $region34: #{_lambda_.1} parent=31 // pred_check_branch
          %224 = sbr.rel (%p222) target = $region36
        $region35: #{_lambda_.1} parent=31 // pred_region
          %s225 = sand.u32 %s29, 1
          %s226 = scalar_lea.sflag [#allocation3], %s225
          %s227 = sand.u32 %s29, 1
          %s228 = smul.addr %s227, 16
          %s229 = scalar_lea.vmem [#allocation2], %s228
          %s231 = ssub.s32 256, 256
          %232 = vsyncadd %s226, %s231
          %s233 = smul.addr %s19, 2
          %s234 = smul.addr %s233, 128
          %s235 = scalar_lea.hbm %s0, %s234
          %s237 = sshll.u32 %s229, 4
          %s238 = int_to_ptr.vmem [resolvable:$true] %s237
          %240 = dma.hbm_to_vmem [thread:$0]  %s235, 256, %s238, %s226
        $region36: #{_lambda_.1} parent=31 // pred_fallthru
          _
      $region32: #{_lambda_.1} parent=5 // pred_fallthru
        _
      %p241 = scmp.le.s32.totalorder 1, %s19
      %p242 = scmp.lt.s32.totalorder %s19, 3
      %p243 = pnand %p241, %p242
      %p244 = pneg %p243
      // Predicated region
      $region37: #{_lambda_.1} parent=5 // pred_check
        _
      $region38: #{_lambda_.1} parent=5 // pred_check_branch
        %246 = sbr.rel (%p243) target = $region40
      $region39: #{_lambda_.1} parent=5 // pred_region
        %s247 = ssub.s32 %s19, 1
        %s248 = sand.u32 %s32, 1
        %s249 = scalar_lea.sflag [#allocation3], %s248
        %s250 = sand.u32 %s32, 1
        %s251 = smul.addr %s250, 16
        %s252 = scalar_lea.vmem [#allocation2], %s251
        // Predicated region
        $region41: #{_lambda_.1} parent=39 // pred_check
          %p253 = pneg %p45
        $region42: #{_lambda_.1} parent=39 // pred_check_branch
          %255 = sbr.rel (%p253) target = $region44
        $region43: #{_lambda_.1} parent=39 // pred_region
          %256 = dma.done %s249, 256
        $region44: #{_lambda_.1} parent=39 // pred_fallthru
          _
        // Predicated region
        $region45: #{_lambda_.1} parent=39 // pred_check
          %p257 = pneg %p66
        $region46: #{_lambda_.1} parent=39 // pred_check_branch
          %259 = sbr.rel (%p257) target = $region48
        $region47: #{_lambda_.1} parent=39 // pred_region
          %260 = dma.done [#allocation6], 4096
        $region48: #{_lambda_.1} parent=39 // pred_fallthru
          _
        // Predicated region
        $region49: #{_lambda_.1} parent=39 // pred_check
          %p261 = pneg %p87
        $region50: #{_lambda_.1} parent=39 // pred_check_branch
          %263 = sbr.rel (%p261) target = $region52
        $region51: #{_lambda_.1} parent=39 // pred_region
          %264 = dma.done [#allocation6], 16
        $region52: #{_lambda_.1} parent=39 // pred_fallthru
          _
        // Predicated region
        $region53: #{_lambda_.1} parent=39 // pred_check
          %p265 = pneg %p108
        $region54: #{_lambda_.1} parent=39 // pred_check_branch
          %267 = sbr.rel (%p265) target = $region56
        $region55: #{_lambda_.1} parent=39 // pred_region
          %268 = dma.done [#allocation9], 4096
        $region56: #{_lambda_.1} parent=39 // pred_fallthru
          _
        // Predicated region
        $region57: #{_lambda_.1} parent=39 // pred_check
          %p269 = pneg %p129
        $region58: #{_lambda_.1} parent=39 // pred_check_branch
          %271 = sbr.rel (%p269) target = $region60
        $region59: #{_lambda_.1} parent=39 // pred_region
          %272 = dma.done [#allocation9], 32
        $region60: #{_lambda_.1} parent=39 // pred_fallthru
          _
        %s273 = sand.u32 %s32, 1
        %s274 = scalar_lea.sflag [#allocation3], %s273
        %s275 = sand.u32 %s32, 1
        %s276 = smul.addr %s275, 16
        %s277 = scalar_lea.vmem [#allocation2], %s276
        %p278 = pneg %p45
        %p279 = pneg %p42
        %p280 = pneg %p66
        %p281 = pneg %p63
        %p282 = pneg %p87
        %p283 = pneg %p84
        %p284 = pneg %p108
        %p285 = pneg %p105
        %p286 = pneg %p129
        %p287 = pneg %p126
        %p288 = pneg %p155
        %p289 = pneg %p152
        %s290 = sand.u32 %s142, 1
        %s291 = scalar_lea.sflag [#allocation4], %s290
        %s292 = sand.u32 %s142, 1
        %s293 = smul.addr %s292, 16
        %s294 = scalar_lea.vmem [#allocation11], %s293
        %v295 = vld [vmem:[%s252] sm:$0xff]
        %v296 = vld [vmem:[%s252 + $0x8] sm:$0xff]
        %v297 = vld [vmem:[#allocation5] sm:$0xff]
        %v298 = vld [vmem:[#allocation5 + $0x8] sm:$0xff]
        %v299 = vld [vmem:[#allocation5 + $0x10] sm:$0xff]
        %v300 = vld [vmem:[#allocation5 + $0x18] sm:$0xff]
        %v301 = vld [vmem:[#allocation5 + $0x20] sm:$0xff]
        %v302 = vld [vmem:[#allocation5 + $0x28] sm:$0xff]
        %v303 = vld [vmem:[#allocation5 + $0x30] sm:$0xff]
        %v304 = vld [vmem:[#allocation5 + $0x38] sm:$0xff]
        %v305 = vld [vmem:[#allocation5 + $0x40] sm:$0xff]
        %v306 = vld [vmem:[#allocation5 + $0x48] sm:$0xff]
        %v307 = vld [vmem:[#allocation5 + $0x50] sm:$0xff]
        %v308 = vld [vmem:[#allocation5 + $0x58] sm:$0xff]
        %v309 = vld [vmem:[#allocation5 + $0x60] sm:$0xff]
        %v310 = vld [vmem:[#allocation5 + $0x68] sm:$0xff]
        %v311 = vld [vmem:[#allocation5 + $0x70] sm:$0xff]
        %v312 = vld [vmem:[#allocation5 + $0x78] sm:$0xff]
        %v313 = vld [vmem:[#allocation5 + $0x80] sm:$0xff]
        %v314 = vld [vmem:[#allocation5 + $0x88] sm:$0xff]
        %v315 = vld [vmem:[#allocation5 + $0x90] sm:$0xff]
        %v316 = vld [vmem:[#allocation5 + $0x98] sm:$0xff]
        %v317 = vld [vmem:[#allocation5 + $0xa0] sm:$0xff]
        %v318 = vld [vmem:[#allocation5 + $0xa8] sm:$0xff]
        %v319 = vld [vmem:[#allocation5 + $0xb0] sm:$0xff]
        %v320 = vld [vmem:[#allocation5 + $0xb8] sm:$0xff]
        %v321 = vld [vmem:[#allocation5 + $0xc0] sm:$0xff]
        %v322 = vld [vmem:[#allocation5 + $0xc8] sm:$0xff]
        %v323 = vld [vmem:[#allocation5 + $0xd0] sm:$0xff]
        %v324 = vld [vmem:[#allocation5 + $0xd8] sm:$0xff]
        %v325 = vld [vmem:[#allocation5 + $0xe0] sm:$0xff]
        %v326 = vld [vmem:[#allocation5 + $0xe8] sm:$0xff]
        %v327 = vld [vmem:[#allocation5 + $0xf0] sm:$0xff]
        %v328 = vld [vmem:[#allocation5 + $0xf8] sm:$0xff]
        %v329 = vld [vmem:[#allocation7] sm:$0x1]
        %v331 = vlaneseq
        %v332 = vshrl.u32 %v331, 7
        %v333 = vsub.s32 0, %v332
        %v334 = vrot.slane %v329, %v333
        %336 = vmatprep.subr.mxu0 0.0
        %337 = vmatpush1.msra.mxu0 %v297
        %338 = vmatprep.subr.mxu0 0.0
        %339 = vmatpush1.msra.mxu0 %v298
        %340 = vmatprep.subr.mxu0 0.0
        %341 = vmatpush1.msra.mxu0 %v299
        %342 = vmatprep.subr.mxu0 0.0
        %343 = vmatpush1.msra.mxu0 %v300
        %344 = vmatprep.subr.mxu0 0.0
        %345 = vmatpush1.msra.mxu0 %v301
        %346 = vmatprep.subr.mxu0 0.0
        %347 = vmatpush1.msra.mxu0 %v302
        %348 = vmatprep.subr.mxu0 0.0
        %349 = vmatpush1.msra.mxu0 %v303
        %350 = vmatprep.subr.mxu0 0.0
        %351 = vmatpush1.msra.mxu0 %v304
        %352 = vmatprep.subr.mxu0 0.0
        %353 = vmatpush1.msra.mxu0 %v305
        %354 = vmatprep.subr.mxu0 0.0
        %355 = vmatpush1.msra.mxu0 %v306
        %356 = vmatprep.subr.mxu0 0.0
        %357 = vmatpush1.msra.mxu0 %v307
        %358 = vmatprep.subr.mxu0 0.0
        %359 = vmatpush1.msra.mxu0 %v308
        %360 = vmatprep.subr.mxu0 0.0
        %361 = vmatpush1.msra.mxu0 %v309
        %362 = vmatprep.subr.mxu0 0.0
        %363 = vmatpush1.msra.mxu0 %v310
        %364 = vmatprep.subr.mxu0 0.0
        %365 = vmatpush1.msra.mxu0 %v311
        %366 = vmatprep.subr.mxu0 0.0
        %367 = vmatpush1.msra.mxu0 %v312
        %368 = vmatprep.subr.mxu0 0.0
        %369 = vmatpush1.msra.mxu0 %v313
        %370 = vmatprep.subr.mxu0 0.0
        %371 = vmatpush1.msra.mxu0 %v314
        %372 = vmatprep.subr.mxu0 0.0
        %373 = vmatpush1.msra.mxu0 %v315
        %374 = vmatprep.subr.mxu0 0.0
        %375 = vmatpush1.msra.mxu0 %v316
        %376 = vmatprep.subr.mxu0 0.0
        %377 = vmatpush1.msra.mxu0 %v317
        %378 = vmatprep.subr.mxu0 0.0
        %379 = vmatpush1.msra.mxu0 %v318
        %380 = vmatprep.subr.mxu0 0.0
        %381 = vmatpush1.msra.mxu0 %v319
        %382 = vmatprep.subr.mxu0 0.0
        %383 = vmatpush1.msra.mxu0 %v320
        %384 = vmatprep.subr.mxu0 0.0
        %385 = vmatpush1.msra.mxu0 %v321
        %386 = vmatprep.subr.mxu0 0.0
        %387 = vmatpush1.msra.mxu0 %v322
        %388 = vmatprep.subr.mxu0 0.0
        %389 = vmatpush1.msra.mxu0 %v323
        %390 = vmatprep.subr.mxu0 0.0
        %391 = vmatpush1.msra.mxu0 %v324
        %392 = vmatprep.subr.mxu0 0.0
        %393 = vmatpush1.msra.mxu0 %v325
        %394 = vmatprep.subr.mxu0 0.0
        %395 = vmatpush1.msra.mxu0 %v326
        %396 = vmatprep.subr.mxu0 0.0
        %397 = vmatpush1.msra.mxu0 %v327
        %398 = vmatprep.subr.mxu0 0.0
        %399 = vmatpush1.msra.mxu0 %v328
        %400 = vmatprep.mubr.f32.mxu0 %v296
        %401 = vmatmul.mubr.f32.gmra.mrb[0].mxu0 %v295
        %v402 = vpop.f32.mrb[0].mxu0
        %v403 = vadd.f32 %v334, %v402
        %v404 = vpop.f32.mrb[0].mxu0
        %405 = vdwg.mxu0
        %v406 = vmul.f32 %v403, 0.5
        %v407 = vmul.f32 %v403, 0.70710677
        %v408 = verf.f32.pop %v407
        %v409 = vadd.f32 %v408, 1.0
        %v410 = vmul.f32 %v406, %v409
        %v411 = vld [vmem:[#allocation8] sm:$0xff]
        %v412 = vld [vmem:[#allocation8 + $0x8] sm:$0xff]
        %v413 = vld [vmem:[#allocation8 + $0x10] sm:$0xff]
        %v414 = vld [vmem:[#allocation8 + $0x18] sm:$0xff]
        %v415 = vld [vmem:[#allocation8 + $0x20] sm:$0xff]
        %v416 = vld [vmem:[#allocation8 + $0x28] sm:$0xff]
        %v417 = vld [vmem:[#allocation8 + $0x30] sm:$0xff]
        %v418 = vld [vmem:[#allocation8 + $0x38] sm:$0xff]
        %v419 = vld [vmem:[#allocation8 + $0x40] sm:$0xff]
        %v420 = vld [vmem:[#allocation8 + $0x48] sm:$0xff]
        %v421 = vld [vmem:[#allocation8 + $0x50] sm:$0xff]
        %v422 = vld [vmem:[#allocation8 + $0x58] sm:$0xff]
        %v423 = vld [vmem:[#allocation8 + $0x60] sm:$0xff]
        %v424 = vld [vmem:[#allocation8 + $0x68] sm:$0xff]
        %v425 = vld [vmem:[#allocation8 + $0x70] sm:$0xff]
        %v426 = vld [vmem:[#allocation8 + $0x78] sm:$0xff]
        %v427 = vld [vmem:[#allocation8 + $0x80] sm:$0xff]
        %v428 = vld [vmem:[#allocation8 + $0x88] sm:$0xff]
        %v429 = vld [vmem:[#allocation8 + $0x90] sm:$0xff]
        %v430 = vld [vmem:[#allocation8 + $0x98] sm:$0xff]
        %v431 = vld [vmem:[#allocation8 + $0xa0] sm:$0xff]
        %v432 = vld [vmem:[#allocation8 + $0xa8] sm:$0xff]
        %v433 = vld [vmem:[#allocation8 + $0xb0] sm:$0xff]
        %v434 = vld [vmem:[#allocation8 + $0xb8] sm:$0xff]
        %v435 = vld [vmem:[#allocation8 + $0xc0] sm:$0xff]
        %v436 = vld [vmem:[#allocation8 + $0xc8] sm:$0xff]
        %v437 = vld [vmem:[#allocation8 + $0xd0] sm:$0xff]
        %v438 = vld [vmem:[#allocation8 + $0xd8] sm:$0xff]
        %v439 = vld [vmem:[#allocation8 + $0xe0] sm:$0xff]
        %v440 = vld [vmem:[#allocation8 + $0xe8] sm:$0xff]
        %v441 = vld [vmem:[#allocation8 + $0xf0] sm:$0xff]
        %v442 = vld [vmem:[#allocation8 + $0xf8] sm:$0xff]
        %v443 = vld [vmem:[#allocation10] sm:$0x3]
        %v445 = vlaneseq
        %v446 = vshrl.u32 %v445, 7
        %v447 = vsub.s32 0, %v446
        %v448 = vrot.slane %v443, %v447
        %v449 = vlaneseq
        %v450 = vshrl.u32 %v449, 7
        %v451 = vsub.s32 1, %v450
        %v452 = vrot.slane %v443, %v451
        %455 = vmatprep.subr.mxu0 %v412
        %456 = vmatpush1.msra.mxu0 %v411
        %457 = vmatprep.subr.mxu0 %v414
        %458 = vmatpush1.msra.mxu0 %v413
        %459 = vmatprep.subr.mxu0 %v416
        %460 = vmatpush1.msra.mxu0 %v415
        %461 = vmatprep.subr.mxu0 %v418
        %462 = vmatpush1.msra.mxu0 %v417
        %463 = vmatprep.subr.mxu0 %v420
        %464 = vmatpush1.msra.mxu0 %v419
        %465 = vmatprep.subr.mxu0 %v422
        %466 = vmatpush1.msra.mxu0 %v421
        %467 = vmatprep.subr.mxu0 %v424
        %468 = vmatpush1.msra.mxu0 %v423
        %469 = vmatprep.subr.mxu0 %v426
        %470 = vmatpush1.msra.mxu0 %v425
        %471 = vmatprep.subr.mxu0 %v428
        %472 = vmatpush1.msra.mxu0 %v427
        %473 = vmatprep.subr.mxu0 %v430
        %474 = vmatpush1.msra.mxu0 %v429
        %475 = vmatprep.subr.mxu0 %v432
        %476 = vmatpush1.msra.mxu0 %v431
        %477 = vmatprep.subr.mxu0 %v434
        %478 = vmatpush1.msra.mxu0 %v433
        %479 = vmatprep.subr.mxu0 %v436
        %480 = vmatpush1.msra.mxu0 %v435
        %481 = vmatprep.subr.mxu0 %v438
        %482 = vmatpush1.msra.mxu0 %v437
        %483 = vmatprep.subr.mxu0 %v440
        %484 = vmatpush1.msra.mxu0 %v439
        %485 = vmatprep.subr.mxu0 %v442
        %486 = vmatpush1.msra.mxu0 %v441
        %487 = vmatprep.subr.mxu0 0.0
        %488 = vmatpush1.msra.mxu0 0.0
        %489 = vmatprep.subr.mxu0 0.0
        %490 = vmatpush1.msra.mxu0 0.0
        %491 = vmatprep.subr.mxu0 0.0
        %492 = vmatpush1.msra.mxu0 0.0
        %493 = vmatprep.subr.mxu0 0.0
        %494 = vmatpush1.msra.mxu0 0.0
        %495 = vmatprep.subr.mxu0 0.0
        %496 = vmatpush1.msra.mxu0 0.0
        %497 = vmatprep.subr.mxu0 0.0
        %498 = vmatpush1.msra.mxu0 0.0
        %499 = vmatprep.subr.mxu0 0.0
        %500 = vmatpush1.msra.mxu0 0.0
        %501 = vmatprep.subr.mxu0 0.0
        %502 = vmatpush1.msra.mxu0 0.0
        %503 = vmatprep.subr.mxu0 0.0
        %504 = vmatpush1.msra.mxu0 0.0
        %505 = vmatprep.subr.mxu0 0.0
        %506 = vmatpush1.msra.mxu0 0.0
        %507 = vmatprep.subr.mxu0 0.0
        %508 = vmatpush1.msra.mxu0 0.0
        %509 = vmatprep.subr.mxu0 0.0
        %510 = vmatpush1.msra.mxu0 0.0
        %511 = vmatprep.subr.mxu0 0.0
        %512 = vmatpush1.msra.mxu0 0.0
        %513 = vmatprep.subr.mxu0 0.0
        %514 = vmatpush1.msra.mxu0 0.0
        %515 = vmatprep.subr.mxu0 0.0
        %516 = vmatpush1.msra.mxu0 0.0
        %517 = vmatprep.subr.mxu0 0.0
        %518 = vmatpush1.msra.mxu0 0.0
        %519 = vmatprep.mubr.f32.mxu0 0.0
        %520 = vmatmul.mubr.f32.gmra.mrb[0].mxu0 %v410
        %v521 = vpop.f32.mrb[0].mxu0
        %v522 = vadd.f32 %v448, %v521
        %v523 = vpop.f32.mrb[0].mxu0
        %v524 = vadd.f32 %v452, %v523
        %525 = vdwg.mxu0
        %526 = vst [vmem:[%s294] sm:$0xff] %v522
        %527 = vst [vmem:[%s294 + $0x8] sm:$0xff] %v524
        %s528 = sand.u32 %s142, 1
        %s529 = scalar_lea.sflag [#allocation4], %s528
        %s530 = sand.u32 %s142, 1
        %s531 = smul.addr %s530, 16
        %s532 = scalar_lea.vmem [#allocation11], %s531
        // Predicated region
        $region61: #{_lambda_.1} parent=39 // pred_check
          %p533 = pneg %p152
        $region62: #{_lambda_.1} parent=39 // pred_check_branch
          %535 = sbr.rel (%p533) target = $region64
        $region63: #{_lambda_.1} parent=39 // pred_region
          %s537 = ssub.s32 256, 256
          %538 = vsyncadd %s529, %s537
          %s539 = smul.addr %s24, 2
          %s540 = smul.addr %s539, 128
          %s541 = scalar_lea.hbm %s5, %s540
          %s543 = sshll.u32 %s532, 4
          %s544 = int_to_ptr.vmem [resolvable:$true] %s543
          %546 = dma.vmem_to_hbm [thread:$0]  %s544, 256, %s541, %s529
        $region64: #{_lambda_.1} parent=39 // pred_fallthru
          _
      $region40: #{_lambda_.1} parent=5 // pred_fallthru
        _
      %p547 = scmp.le.s32.totalorder 2, %s19
      // Predicated region
      $region65: #{_lambda_.1} parent=5 // pred_check
        %p548 = pneg %p547
      $region66: #{_lambda_.1} parent=5 // pred_check_branch
        %550 = sbr.rel (%p548) target = $region68
      $region67: #{_lambda_.1} parent=5 // pred_region
        %s551 = ssub.s32 %s19, 2
        // Predicated region
        $region69: #{_lambda_.1} parent=67 // pred_check
          %p552 = pneg %p158
        $region70: #{_lambda_.1} parent=67 // pred_check_branch
          %554 = sbr.rel (%p552) target = $region72
        $region71: #{_lambda_.1} parent=67 // pred_region
          %s555 = sand.u32 %s143, 1
          %s556 = scalar_lea.sflag [#allocation4], %s555
          %s557 = sand.u32 %s143, 1
          %s558 = smul.addr %s557, 16
          %s559 = scalar_lea.vmem [#allocation11], %s558
          %560 = dma.done %s556, 256
        $region72: #{_lambda_.1} parent=67 // pred_fallthru
          _
      $region68: #{_lambda_.1} parent=5 // pred_fallthru
        _
    $region6: #{_lambda_.1} parent=1 // loop_footer
      %s23 = sadd.s32 1, %s19
    $region7: #{_lambda_.1} parent=1 // loop_footer_branch
      %18 = sbr.rel target = $region3
    $region8: #{_lambda_.1} parent=1 // loop_exit
      _
    %561 = vsyncpa [#allocation3], 1
    %s562 = scalar_lea.sflag [#allocation3], 1
    %563 = vsyncpa %s562, 1
    %564 = vsyncpa [#allocation6], 1
    %565 = vsyncpa [#allocation9], 1
    %566 = vsyncpa [#allocation4], 1
    %s567 = scalar_lea.sflag [#allocation4], 1
    %568 = vsyncpa %s567, 1

</llo_original>
